<compile_context>
chip_gen: v7x
topology: tpu7x:2x2x1
jax: 0.10.0
libtpu: 0.0.40
codegen_flags: <defaults>
</compile_context>

<pallas_src>
import jax
import jax.numpy as jnp
from jax import lax
from jax.experimental import pallas as pl
from jax.experimental.pallas import tpu as pltpu


def _quantize_kernel(x_ref, w_ref, wt_ref, w2_ref, q_ref, idx_ref):
    # x_ref : (D, TN) tile of inputs in (code_dim, flattened-pixel) layout.
    # w_ref : (K, D)  full codebook.
    # wt_ref: (D, K)  pre-transposed codebook (hoisted to the wrapper).
    # w2_ref: (K, 1)  precomputed ||w_k||^2    (hoisted to the wrapper).
    x = x_ref[...].astype(jnp.float32)     # (D, TN)
    w = w_ref[...].astype(jnp.float32)     # (K, D)
    wt = wt_ref[...].astype(jnp.float32)   # (D, K)
    w2 = w2_ref[...].astype(jnp.float32)   # (K, 1)

    # Squared-distance surrogate:
    #   argmin_k (||x||^2 - 2 x.w_k + ||w_k||^2) == argmin_k (||w_k||^2 - 2 x.w_k)
    xw = jnp.dot(w, x, preferred_element_type=jnp.float32)   # (K, TN) on MXU
    score = w2 - 2.0 * xw                                    # (K, TN)

    k = score.shape[0]
    smin = jnp.min(score, axis=0, keepdims=True)             # (1, TN)
    kiota = lax.broadcasted_iota(jnp.int32, score.shape, 0)  # (K, TN)
    fiota = kiota.astype(jnp.float32)

    # argmin over the code axis, first index on ties (matches torch.max(-d)).
    idx_f = jnp.min(jnp.where(score <= smin, fiota, jnp.float32(k)),
                    axis=0, keepdims=True)                   # (1, TN)

    # Gather the selected codebook rows with a lane-dense one-hot matmul:
    #   q[d, t] = sum_k wt[d, k] * onehot[k, t]   (contraction over K on the MXU)
    onehot = (fiota == idx_f).astype(jnp.float32)            # (K, TN)
    q = jnp.dot(wt, onehot, preferred_element_type=jnp.float32)  # (D, TN)

    q_ref[...] = q.astype(q_ref.dtype)
    idx_ref[...] = idx_f.astype(jnp.int32)


def quantize_forward(x, codebook, *, tile_n=2048):
    """VQ-VAE quantize forward.

    x: (B, C, H, W) float, codebook: (K, D) float with D == C.
    Returns (quantized, straight_through, idxs) with shapes
    (B, C, H, W), (B, C, H, W), (B, H, W) -- same as the PyTorch module.
    """
    b, c, h, w = x.shape
    k, d = codebook.shape
    assert d == c, "code_dim must equal channel dim"
    n = b * h * w

    # NCHW-native (D, N) layout: (B, C, H*W) -> (C, B, H*W) -> (D, N).
    # The minor dim stays H*W, so this transpose is lane-dense and cheap.
    x_dn = jnp.transpose(x.reshape(b, c, h * w), (1, 0, 2)).reshape(c, n)

    # Tile size: as large as practical (per-grid-step overhead dominates small
    # tiles), but keep >= 2 grid steps when possible so both v7x TensorCores
    # get work; pad N up to a multiple of the tile so ragged shapes work.
    tn = min(tile_n, n)
    if n >= 256 and tn > n // 2:
        tn = n // 2
    tn = max(128, (tn // 128) * 128)
    n_pad = ((n + tn - 1) // tn) * tn
    if n_pad != n:
        x_dn = jnp.pad(x_dn, ((0, 0), (0, n_pad - n)))

    # Codebook-only terms hoisted out of the per-step path.
    cb = codebook.astype(jnp.float32)                  # (K, D)
    cb_t = cb.T                                        # (D, K)
    cb_sq = jnp.sum(cb * cb, axis=-1, keepdims=True)   # (K, 1)

    grid = (n_pad // tn,)
    q_dn, idx_2d = pl.pallas_call(
        _quantize_kernel,
        out_shape=(
            jax.ShapeDtypeStruct((d, n_pad), x.dtype),
            jax.ShapeDtypeStruct((1, n_pad), jnp.int32),
        ),
        grid_spec=pltpu.PrefetchScalarGridSpec(
            num_scalar_prefetch=0,
            grid=grid,
            in_specs=[
                pl.BlockSpec((d, tn), lambda i: (0, i)),   # input tile (lane-dense)
                pl.BlockSpec((k, d), lambda i: (0, 0)),    # codebook (resident)
                pl.BlockSpec((d, k), lambda i: (0, 0)),    # codebook^T (resident)
                pl.BlockSpec((k, 1), lambda i: (0, 0)),    # ||w||^2 (resident)
            ],
            out_specs=[
                pl.BlockSpec((d, tn), lambda i: (0, i)),   # quantized (lane-dense)
                pl.BlockSpec((1, tn), lambda i: (0, i)),   # indices
            ],
        ),
        compiler_params=pltpu.CompilerParams(
            dimension_semantics=("parallel",),
            vmem_limit_bytes=32 * 1024 * 1024,
        ),
    )(x_dn, cb, cb_t, cb_sq)

    q_dn = q_dn[:, :n]
    idx_flat = idx_2d[0, :n]

    # (D, N) -> (B, C, H, W)
    quantized = jnp.transpose(q_dn.reshape(c, b, h, w), (1, 0, 2, 3))
    idxs = idx_flat.reshape(b, h, w)
    straight_through = lax.stop_gradient(quantized - x) + x
    return quantized, straight_through, idxs


def _reference(x, codebook):
    # Pure-JAX reference of the PyTorch forward (for correctness checks).
    b, c, h, w = x.shape
    flat = jnp.transpose(x, (0, 2, 3, 1)).reshape(-1, c)
    dists = jnp.sum((flat[:, None, :] - codebook[None, :, :]) ** 2, axis=-1)
    idx = jnp.argmin(dists, axis=-1)
    q = codebook[idx].reshape(b, h, w, c)
    q = jnp.transpose(q, (0, 3, 1, 2))
    return q, idx.reshape(b, h, w)


if __name__ == "__main__":
    # Module config (small, consistent with the forward pass).
    code_dim = 4      # = channel dim C
    code_size = 128   # K

    # Deterministic "learnable" embedding init: uniform(-1/K, 1/K), like PyTorch.
    key = jax.random.PRNGKey(0)
    k_emb, k_x = jax.random.split(key)
    codebook = jax.random.uniform(
        k_emb, (code_size, code_dim), dtype=jnp.float32,
        minval=-1.0 / code_size, maxval=1.0 / code_size)

    # Encoder output x: (B, C, H, W)
    x = jax.random.normal(k_x, (2, code_dim, 16, 16), dtype=jnp.float32) * 0.05

    quantized, st, idxs = quantize_forward(x, codebook)
    jax.block_until_ready((quantized, st, idxs))

    b, c, h, w = x.shape
    q_ref, idx_ref = _reference(x, codebook)

    # (1) Nearest-code property (robust to float near-ties between the expanded
    #     and direct distance formulations).
    flat = jnp.transpose(x, (0, 2, 3, 1)).reshape(-1, c)
    d_all = jnp.sum((flat[:, None, :] - codebook[None, :, :]) ** 2, axis=-1)
    d_min = jnp.min(d_all, axis=-1)
    d_sel = jnp.take_along_axis(d_all, idxs.reshape(-1, 1), axis=-1)[:, 0]
    assert bool(jnp.all(d_sel <= d_min + 1e-7)), "kernel did not pick nearest code"

    # (2) Indices agree with the plain argmin reference (allowing rare near-ties).
    assert float(jnp.mean(idxs == idx_ref)) > 0.99, "index mismatch vs reference"

    # (3) Quantized output equals the codebook rows gathered at the kernel's indices.
    q_gather = jnp.transpose(
        codebook[idxs.reshape(-1)].reshape(b, h, w, c), (0, 3, 1, 2))
    assert bool(jnp.allclose(quantized, q_gather, atol=1e-6)), "quantized mismatch"

    # (4) Straight-through estimator and shapes.
    assert bool(jnp.allclose(st, q_gather, atol=1e-6)), "straight-through mismatch"
    assert quantized.shape == x.shape and idxs.shape == (b, h, w)

    print("KERNEL_OK")
</pallas_src>

<mosaic_0001>
module attributes {stable_mosaic.version = 11 : i64} {
  func.func @_quantize_kernel(%arg0: i32, %arg1: memref<4x256xf32, #tpu.memory_space<vmem>>, %arg2: memref<128x4xf32, #tpu.memory_space<vmem>>, %arg3: memref<4x128xf32, #tpu.memory_space<vmem>>, %arg4: memref<128x1xf32, #tpu.memory_space<vmem>>, %arg5: memref<4x256xf32, #tpu.memory_space<vmem>>, %arg6: memref<1x256xi32, #tpu.memory_space<vmem>>) attributes {dimension_semantics = [#tpu.dimension_semantics<parallel>], iteration_bounds = array<i64: 2>, scalar_prefetch = 0 : i64, scratch_operands = 0 : i64, tpu.core_type = #tpu.core_type<tc>, window_params = [{transform_indices = @transform_0, window_bounds = array<i64: 4, 256>}, {pipeline_mode = #tpu.pipeline_mode<synchronous>, transform_indices = @transform_1, window_bounds = array<i64: 128, 4>}, {pipeline_mode = #tpu.pipeline_mode<synchronous>, transform_indices = @transform_2, window_bounds = array<i64: 4, 128>}, {pipeline_mode = #tpu.pipeline_mode<synchronous>, transform_indices = @transform_3, window_bounds = array<i64: 128, 1>}, {transform_indices = @transform_4, window_bounds = array<i64: 4, 256>}, {transform_indices = @transform_5, window_bounds = array<i64: 1, 256>}]} {
    %c0 = arith.constant 0 : index
    %c0_0 = arith.constant 0 : index
    %0 = vector.load %arg1[%c0, %c0_0] : memref<4x256xf32, #tpu.memory_space<vmem>>, vector<4x256xf32>
    %c0_1 = arith.constant 0 : index
    %c0_2 = arith.constant 0 : index
    %1 = vector.load %arg2[%c0_1, %c0_2] : memref<128x4xf32, #tpu.memory_space<vmem>>, vector<128x4xf32>
    %c0_3 = arith.constant 0 : index
    %c0_4 = arith.constant 0 : index
    %2 = vector.load %arg3[%c0_3, %c0_4] : memref<4x128xf32, #tpu.memory_space<vmem>>, vector<4x128xf32>
    %c0_5 = arith.constant 0 : index
    %c0_6 = arith.constant 0 : index
    %3 = vector.load %arg4[%c0_5, %c0_6] : memref<128x1xf32, #tpu.memory_space<vmem>>, vector<128x1xf32>
    %cst = arith.constant dense<0.000000e+00> : vector<128x256xf32>
    %4 = tpu.matmul %1, %0, %cst {dimension_numbers = #tpu.dot_dimension_numbers<[1], [0], [0], [1], [0, 0, 1, 1], [], []>} : vector<128x4xf32>, vector<4x256xf32>, vector<128x256xf32> -> vector<128x256xf32>
    %cst_7 = arith.constant 2.000000e+00 : f32
    %5 = vector.broadcast %cst_7 : f32 to vector<128x256xf32>
    %6 = arith.mulf %5, %4 : vector<128x256xf32>
    %7 = vector.broadcast %3 : vector<128x1xf32> to vector<128x256xf32>
    %8 = arith.subf %7, %6 : vector<128x256xf32>
    %cst_8 = arith.constant dense<0x7F800000> : vector<256xf32>
    %9 = vector.multi_reduction <minimumf>, %8, %cst_8 [0] : vector<128x256xf32> to vector<256xf32>
    %10 = vector.shape_cast %9 : vector<256xf32> to vector<1x256xf32>
    %11 = tpu.iota {dimensions = array<i32: 0>} : vector<128x256xi32>
    %12 = arith.sitofp %11 : vector<128x256xi32> to vector<128x256xf32>
    %13 = vector.broadcast %10 : vector<1x256xf32> to vector<128x256xf32>
    %14 = arith.cmpf ole, %8, %13 : vector<128x256xf32>
    %cst_9 = arith.constant 1.280000e+02 : f32
    %15 = vector.broadcast %cst_9 : f32 to vector<128x256xf32>
    %16 = arith.select %14, %12, %15 : vector<128x256xi1>, vector<128x256xf32>
    %cst_10 = arith.constant dense<0x7F800000> : vector<256xf32>
    %17 = vector.multi_reduction <minimumf>, %16, %cst_10 [0] : vector<128x256xf32> to vector<256xf32>
    %18 = vector.shape_cast %17 : vector<256xf32> to vector<1x256xf32>
    %19 = vector.broadcast %18 : vector<1x256xf32> to vector<128x256xf32>
    %20 = arith.cmpf oeq, %12, %19 : vector<128x256xf32>
    %21 = arith.extui %20 : vector<128x256xi1> to vector<128x256xi32>
    %22 = arith.sitofp %21 : vector<128x256xi32> to vector<128x256xf32>
    %cst_11 = arith.constant dense<0.000000e+00> : vector<4x256xf32>
    %23 = tpu.matmul %2, %22, %cst_11 {dimension_numbers = #tpu.dot_dimension_numbers<[1], [0], [0], [1], [0, 0, 1, 1], [], []>} : vector<4x128xf32>, vector<128x256xf32>, vector<4x256xf32> -> vector<4x256xf32>
    %c0_12 = arith.constant 0 : index
    %c0_13 = arith.constant 0 : index
    %24 = vector.load %arg5[%c0_12, %c0_13] : memref<4x256xf32, #tpu.memory_space<vmem>>, vector<4x256xf32>
    tpu.vector_store %arg5[%c0_12, %c0_13], %23 {strides = array<i32>} : memref<4x256xf32, #tpu.memory_space<vmem>>, vector<4x256xf32>,
    %25 = arith.fptosi %18 : vector<1x256xf32> to vector<1x256xi32>
    %c0_14 = arith.constant 0 : index
    %c0_15 = arith.constant 0 : index
    %26 = vector.load %arg6[%c0_14, %c0_15] : memref<1x256xi32, #tpu.memory_space<vmem>>, vector<1x256xi32>
    tpu.vector_store %arg6[%c0_14, %c0_15], %25 {strides = array<i32>} : memref<1x256xi32, #tpu.memory_space<vmem>>, vector<1x256xi32>,
    return
  }
  func.func @transform_0(%arg0: i32) -> (i32, i32) {
    %c0_i32 = arith.constant 0 : i32
    %c0_i32_0 = arith.constant 0 : i32
    return %c0_i32, %arg0 : i32, i32
  }
  func.func @transform_1(%arg0: i32) -> (i32, i32) {
    %c0_i32 = arith.constant 0 : i32
    %c0_i32_0 = arith.constant 0 : i32
    %c0_i32_1 = arith.constant 0 : i32
    return %c0_i32, %c0_i32_0 : i32, i32
  }
  func.func @transform_2(%arg0: i32) -> (i32, i32) {
    %c0_i32 = arith.constant 0 : i32
    %c0_i32_0 = arith.constant 0 : i32
    %c0_i32_1 = arith.constant 0 : i32
    return %c0_i32, %c0_i32_0 : i32, i32
  }
  func.func @transform_3(%arg0: i32) -> (i32, i32) {
    %c0_i32 = arith.constant 0 : i32
    %c0_i32_0 = arith.constant 0 : i32
    %c0_i32_1 = arith.constant 0 : i32
    return %c0_i32, %c0_i32_0 : i32, i32
  }
  func.func @transform_4(%arg0: i32) -> (i32, i32) {
    %c0_i32 = arith.constant 0 : i32
    %c0_i32_0 = arith.constant 0 : i32
    return %c0_i32, %arg0 : i32, i32
  }
  func.func @transform_5(%arg0: i32) -> (i32, i32) {
    %c0_i32 = arith.constant 0 : i32
    %c0_i32_0 = arith.constant 0 : i32
    return %c0_i32, %arg0 : i32, i32
  }
}

</mosaic_0001>

<llo_original>
// kernel: tpu_custom_call.1
$region0: #{tpu_custom_call.1}
  #allocation0 [shape = 'u32[]', space=smem, size = 0x4, offset = 0x4, fixed_abs, tag = 'smem constant byte address 0x4 - core index']
  #allocation1 [shape = 'u32[144,128]{1,0:T(1,128)}', space=vmem, size = 0x12000, scoped, tag = 'internal scratch']
  %s0 = inlined_call_operand.vmem [shape: f32[4,512], index: 0, kind: input, shape index: {}]
  %s1 = inlined_call_operand.vmem [shape: f32[128,4], index: 1, kind: input, shape index: {}]
  %s2 = inlined_call_operand.vmem [shape: f32[4,128], index: 2, kind: input, shape index: {}]
  %s3 = inlined_call_operand.vmem [shape: f32[128,1], index: 3, kind: input, shape index: {}]
  %s4 = inlined_call_operand.hbm [shape: f32[4,512], index: 4, kind: output, shape index: {0}]
  %s5 = inlined_call_operand.hbm [shape: s32[1,512], index: 5, kind: output, shape index: {1}]
  %6 = xla_tuple %s4, %s5
  %s7 = sld [smem:[#allocation0]]
  $region57: #{tpu_custom_call.1} parent=0
    _
  %s9 = ssub.s32 1, %s7
  %s10 = scalar_select 0, %s9, %s7
  $region1: #{tpu_custom_call.1} parent=0
    #allocation2 [shape = 'u8[8192]{0}', space=vmem, size = 0x2000, scoped, tag = 'output window, operand 0']
    #allocation3 [shape = 's32[2]{0}', space=sflag, size = 0x8, scoped, tag = 'scoped memory for tpu_custom_call.1']
    #allocation4 [shape = 'u8[2048]{0}', space=vmem, size = 0x800, scoped, tag = 'output window, operand 1']
    #allocation5 [shape = 's32[2]{0}', space=sflag, size = 0x8, scoped, tag = 'scoped memory for tpu_custom_call.1']
    %11 = vsyncpa [#allocation3], 0
    %s12 = scalar_lea.sflag [#allocation3], 1
    %13 = vsyncpa %s12, 0
    %14 = vsyncpa [#allocation5], 0
    %s15 = scalar_lea.sflag [#allocation5], 1
    %16 = vsyncpa %s15, 0
    loop: start=0, step=1, limit=4
    $region2: #{tpu_custom_call.1} parent=1 // loop_pre_header
      _
    $region3: #{tpu_custom_call.1} parent=1 // loop_header
      %s18 = sphi 0, %s22
      %p19 = scmp.ge.s32.totalorder %s18, 4
      %s28 = sphi 0, %s30
      %s31 = sphi 0, %s28
      %s32 = sphi 0, %s31
      %s48 = sphi 0, %s32
      %s52 = sphi 0, %s52
      %s54 = sphi 0, %s52
      %s55 = sphi 0, %s54
      %s69 = sphi 0, %s55
      %s73 = sphi 0, %s73
      %s75 = sphi 0, %s73
      %s76 = sphi 0, %s75
      %s90 = sphi 0, %s76
      %s94 = sphi 0, %s94
      %s96 = sphi 0, %s94
      %s97 = sphi 0, %s96
      %s111 = sphi 0, %s97
      %s117 = sphi 0, %s119
      %s120 = sphi 0, %s117
      %s121 = sphi 0, %s120
      %s137 = sphi 0, %s121
      %s143 = sphi 0, %s145
      %s146 = sphi 0, %s143
      %s147 = sphi 0, %s146
      %s163 = sphi 0, %s147
    $region4: #{tpu_custom_call.1} parent=1 // loop_header_branch
      %21 = sbr.rel (%p19) target = $region8
    $region5: #{tpu_custom_call.1} parent=1 // loop_body
      %s23 = ssub.s32 %s18, 1
      %s24 = ssub.s32 %s18, 2
      %s25 = sadd.s32 %s18, 1
      %s26 = ssub.s32 %s18, %s25
      %p27 = scmp.eq.s32.totalorder %s26, 0
      %s29 = sadd.s32 %s28, 1
      %s30 = scalar_select %p27, %s28, %s29
      %p33 = pneg %p27
      %p34 = scmp.eq.s32.totalorder %s18, 1
      %p35 = por %p33, %p34
      %p36 = scmp.ne.s32.totalorder %s28, %s31
      %p37 = scmp.eq.s32.totalorder %s18, 0
      %p38 = por %p36, %p37
      %p39 = scmp.ne.s32.totalorder %s28, %s31
      %p40 = scmp.eq.s32.totalorder %s23, 1
      %p41 = por %p39, %p40
      %p42 = scmp.ne.s32.totalorder %s31, %s32
      %p43 = scmp.eq.s32.totalorder %s23, 0
      %p44 = por %p42, %p43
      %p45 = scmp.ne.s32.totalorder %s31, %s32
      %p46 = scmp.eq.s32.totalorder %s24, 1
      %p47 = por %p45, %p46
      %p49 = scmp.ne.s32.totalorder %s32, %s48
      %p50 = scmp.eq.s32.totalorder %s24, 0
      %p51 = por %p49, %p50
      %s53 = sadd.s32 %s52, 1
      %p56 = scmp.eq.s32.totalorder %s18, 1
      %p57 = scmp.ne.s32.totalorder %s52, %s54
      %p58 = scmp.eq.s32.totalorder %s18, 0
      %p59 = por %p57, %p58
      %p60 = scmp.ne.s32.totalorder %s52, %s54
      %p61 = scmp.eq.s32.totalorder %s23, 1
      %p62 = por %p60, %p61
      %p63 = scmp.ne.s32.totalorder %s54, %s55
      %p64 = scmp.eq.s32.totalorder %s23, 0
      %p65 = por %p63, %p64
      %p66 = scmp.ne.s32.totalorder %s54, %s55
      %p67 = scmp.eq.s32.totalorder %s24, 1
      %p68 = por %p66, %p67
      %p70 = scmp.ne.s32.totalorder %s55, %s69
      %p71 = scmp.eq.s32.totalorder %s24, 0
      %p72 = por %p70, %p71
      %s74 = sadd.s32 %s73, 1
      %p77 = scmp.eq.s32.totalorder %s18, 1
      %p78 = scmp.ne.s32.totalorder %s73, %s75
      %p79 = scmp.eq.s32.totalorder %s18, 0
      %p80 = por %p78, %p79
      %p81 = scmp.ne.s32.totalorder %s73, %s75
      %p82 = scmp.eq.s32.totalorder %s23, 1
      %p83 = por %p81, %p82
      %p84 = scmp.ne.s32.totalorder %s75, %s76
      %p85 = scmp.eq.s32.totalorder %s23, 0
      %p86 = por %p84, %p85
      %p87 = scmp.ne.s32.totalorder %s75, %s76
      %p88 = scmp.eq.s32.totalorder %s24, 1
      %p89 = por %p87, %p88
      %p91 = scmp.ne.s32.totalorder %s76, %s90
      %p92 = scmp.eq.s32.totalorder %s24, 0
      %p93 = por %p91, %p92
      %s95 = sadd.s32 %s94, 1
      %p98 = scmp.eq.s32.totalorder %s18, 1
      %p99 = scmp.ne.s32.totalorder %s94, %s96
      %p100 = scmp.eq.s32.totalorder %s18, 0
      %p101 = por %p99, %p100
      %p102 = scmp.ne.s32.totalorder %s94, %s96
      %p103 = scmp.eq.s32.totalorder %s23, 1
      %p104 = por %p102, %p103
      %p105 = scmp.ne.s32.totalorder %s96, %s97
      %p106 = scmp.eq.s32.totalorder %s23, 0
      %p107 = por %p105, %p106
      %p108 = scmp.ne.s32.totalorder %s96, %s97
      %p109 = scmp.eq.s32.totalorder %s24, 1
      %p110 = por %p108, %p109
      %p112 = scmp.ne.s32.totalorder %s97, %s111
      %p113 = scmp.eq.s32.totalorder %s24, 0
      %p114 = por %p112, %p113
      %s115 = ssub.s32 %s18, %s25
      %p116 = scmp.eq.s32.totalorder %s115, 0
      %s118 = sadd.s32 %s117, 1
      %s119 = scalar_select %p116, %s117, %s118
      %p122 = pneg %p116
      %p123 = scmp.eq.s32.totalorder %s18, 1
      %p124 = por %p122, %p123
      %p125 = scmp.ne.s32.totalorder %s117, %s120
      %p126 = scmp.eq.s32.totalorder %s18, 0
      %p127 = por %p125, %p126
      %p128 = scmp.ne.s32.totalorder %s117, %s120
      %p129 = scmp.eq.s32.totalorder %s23, 1
      %p130 = por %p128, %p129
      %p131 = scmp.ne.s32.totalorder %s120, %s121
      %p132 = scmp.eq.s32.totalorder %s23, 0
      %p133 = por %p131, %p132
      %p134 = scmp.ne.s32.totalorder %s120, %s121
      %p135 = scmp.eq.s32.totalorder %s24, 1
      %p136 = por %p134, %p135
      %p138 = scmp.ne.s32.totalorder %s121, %s137
      %p139 = scmp.eq.s32.totalorder %s24, 0
      %p140 = por %p138, %p139
      %s141 = ssub.s32 %s18, %s25
      %p142 = scmp.eq.s32.totalorder %s141, 0
      %s144 = sadd.s32 %s143, 1
      %s145 = scalar_select %p142, %s143, %s144
      %p148 = pneg %p142
      %p149 = scmp.eq.s32.totalorder %s18, 1
      %p150 = por %p148, %p149
      %p151 = scmp.ne.s32.totalorder %s143, %s146
      %p152 = scmp.eq.s32.totalorder %s18, 0
      %p153 = por %p151, %p152
      %p154 = scmp.ne.s32.totalorder %s143, %s146
      %p155 = scmp.eq.s32.totalorder %s23, 1
      %p156 = por %p154, %p155
      %p157 = scmp.ne.s32.totalorder %s146, %s147
      %p158 = scmp.eq.s32.totalorder %s23, 0
      %p159 = por %p157, %p158
      %p160 = scmp.ne.s32.totalorder %s146, %s147
      %p161 = scmp.eq.s32.totalorder %s24, 1
      %p162 = por %p160, %p161
      %p164 = scmp.ne.s32.totalorder %s147, %s163
      %p165 = scmp.eq.s32.totalorder %s24, 0
      %p166 = por %p164, %p165
      %p167 = scmp.le.s32.totalorder 1, %s18
      %p168 = scmp.lt.s32.totalorder %s18, 3
      %p169 = pnand %p167, %p168
      %p170 = pneg %p169
      // Predicated region
      $region9: #{tpu_custom_call.1} parent=5 // pred_check
        _
      $region10: #{tpu_custom_call.1} parent=5 // pred_check_branch
        %172 = sbr.rel (%p169) target = $region12
      $region11: #{tpu_custom_call.1} parent=5 // pred_region
        %s173 = ssub.s32 %s18, 1
        // Predicated region
        $region13: #{tpu_custom_call.1} parent=11 // pred_check
          %p174 = pneg %p65
        $region14: #{tpu_custom_call.1} parent=11 // pred_check_branch
          %176 = sbr.rel (%p174) target = $region16
        $region15: #{tpu_custom_call.1} parent=11 // pred_region
          _
        $region16: #{tpu_custom_call.1} parent=11 // pred_fallthru
          _
        // Predicated region
        $region17: #{tpu_custom_call.1} parent=11 // pred_check
          %p177 = pneg %p86
        $region18: #{tpu_custom_call.1} parent=11 // pred_check_branch
          %179 = sbr.rel (%p177) target = $region20
        $region19: #{tpu_custom_call.1} parent=11 // pred_region
          _
        $region20: #{tpu_custom_call.1} parent=11 // pred_fallthru
          _
        // Predicated region
        $region21: #{tpu_custom_call.1} parent=11 // pred_check
          %p180 = pneg %p107
        $region22: #{tpu_custom_call.1} parent=11 // pred_check_branch
          %182 = sbr.rel (%p180) target = $region24
        $region23: #{tpu_custom_call.1} parent=11 // pred_region
          _
        $region24: #{tpu_custom_call.1} parent=11 // pred_fallthru
          _
      $region12: #{tpu_custom_call.1} parent=5 // pred_fallthru
        _
      %p183 = scmp.lt.s32.totalorder %s18, 2
      // Predicated region
      $region25: #{tpu_custom_call.1} parent=5 // pred_check
        %p184 = pneg %p183
      $region26: #{tpu_custom_call.1} parent=5 // pred_check_branch
        %186 = sbr.rel (%p184) target = $region28
      $region27: #{tpu_custom_call.1} parent=5 // pred_region
        // Predicated region
        $region29: #{tpu_custom_call.1} parent=27 // pred_check
          %p187 = pneg %p38
        $region30: #{tpu_custom_call.1} parent=27 // pred_check_branch
          %189 = sbr.rel (%p187) target = $region32
        $region31: #{tpu_custom_call.1} parent=27 // pred_region
          %s190 = smul.u32 2, %s18
          %p191 = scmp.lt.s32.totalorder %s190, 3
          %s192 = scalar_select %p191, %s190, 3
          %s193 = smul.addr %s192, 4
          %s194 = scalar_lea.vmem %s0, %s193
          %s195 = smul.u32 2, %s18
        $region32: #{tpu_custom_call.1} parent=27 // pred_fallthru
          _
      $region28: #{tpu_custom_call.1} parent=5 // pred_fallthru
        _
      %p196 = scmp.le.s32.totalorder 1, %s18
      %p197 = scmp.lt.s32.totalorder %s18, 3
      %p198 = pnand %p196, %p197
      %p199 = pneg %p198
      // Predicated region
      $region33: #{tpu_custom_call.1} parent=5 // pred_check
        _
      $region34: #{tpu_custom_call.1} parent=5 // pred_check_branch
        %201 = sbr.rel (%p198) target = $region36
      $region35: #{tpu_custom_call.1} parent=5 // pred_region
        %s202 = ssub.s32 %s18, 1
        %s203 = smul.u32 2, %s23
        %p204 = scmp.lt.s32.totalorder %s203, 3
        %s205 = scalar_select %p204, %s203, 3
        %s206 = smul.addr %s205, 4
        %s207 = scalar_lea.vmem %s0, %s206
        %p208 = pneg %p44
        %p209 = pneg %p41
        %p210 = pneg %p65
        %p211 = pneg %p62
        %p212 = pneg %p86
        %p213 = pneg %p83
        %p214 = pneg %p107
        %p215 = pneg %p104
        %p216 = pneg %p133
        %p217 = pneg %p130
        %s218 = sand.u32 %s120, 1
        %s219 = scalar_lea.sflag [#allocation3], %s218
        %s220 = sand.u32 %s120, 1
        %s221 = smul.addr %s220, 8
        %s222 = scalar_lea.vmem [#allocation2], %s221
        %p223 = pneg %p159
        %p224 = pneg %p156
        %s225 = sand.u32 %s146, 1
        %s226 = scalar_lea.sflag [#allocation5], %s225
        %s227 = sand.u32 %s146, 1
        %s228 = smul.addr %s227, 2
        %s229 = scalar_lea.vmem [#allocation4], %s228
        %s230 = smul.u32 2, %s23
        %p231 = scmp.lt.s32.totalorder %s230, 3
        %s232 = scalar_select %p231, %s230, 3
        %s233 = smul.addr %s232, 4
        %s234 = scalar_lea.vmem %s0, %s233
        %s235 = smul.u32 2, %s23
        %s236 = smul.u32 2, %s23
        %s237 = smul.u32 2, %s23
        %v238 = vld [vmem:[%s234] sm:$0xff]
        %v239 = vld [vmem:[%s1] sm:$0xff]
        %v240 = vld [vmem:[%s1 + $0x8] sm:$0xff]
        %v241 = vld [vmem:[%s1 + $0x10] sm:$0xff]
        %v242 = vld [vmem:[%s1 + $0x18] sm:$0xff]
        %v243 = vld [vmem:[%s1 + $0x20] sm:$0xff]
        %v244 = vld [vmem:[%s1 + $0x28] sm:$0xff]
        %v245 = vld [vmem:[%s1 + $0x30] sm:$0xff]
        %v246 = vld [vmem:[%s1 + $0x38] sm:$0xff]
        %v247 = vld [vmem:[%s1 + $0x40] sm:$0xff]
        %v248 = vld [vmem:[%s1 + $0x48] sm:$0xff]
        %v249 = vld [vmem:[%s1 + $0x50] sm:$0xff]
        %v250 = vld [vmem:[%s1 + $0x58] sm:$0xff]
        %v251 = vld [vmem:[%s1 + $0x60] sm:$0xff]
        %v252 = vld [vmem:[%s1 + $0x68] sm:$0xff]
        %v253 = vld [vmem:[%s1 + $0x70] sm:$0xff]
        %v254 = vld [vmem:[%s1 + $0x78] sm:$0xff]
        %v255 = vld [vmem:[%s2] sm:$0xf]
        %v256 = vld [vmem:[%s3] sm:$0xff]
        %v257 = vld [vmem:[%s3 + $0x8] sm:$0xff]
        %v258 = vld [vmem:[%s3 + $0x10] sm:$0xff]
        %v259 = vld [vmem:[%s3 + $0x18] sm:$0xff]
        %v260 = vld [vmem:[%s3 + $0x20] sm:$0xff]
        %v261 = vld [vmem:[%s3 + $0x28] sm:$0xff]
        %v262 = vld [vmem:[%s3 + $0x30] sm:$0xff]
        %v263 = vld [vmem:[%s3 + $0x38] sm:$0xff]
        %v264 = vld [vmem:[%s3 + $0x40] sm:$0xff]
        %v265 = vld [vmem:[%s3 + $0x48] sm:$0xff]
        %v266 = vld [vmem:[%s3 + $0x50] sm:$0xff]
        %v267 = vld [vmem:[%s3 + $0x58] sm:$0xff]
        %v268 = vld [vmem:[%s3 + $0x60] sm:$0xff]
        %v269 = vld [vmem:[%s3 + $0x68] sm:$0xff]
        %v270 = vld [vmem:[%s3 + $0x70] sm:$0xff]
        %v271 = vld [vmem:[%s3 + $0x78] sm:$0xff]
        %v273 = vcombine.high %v238, %v238
        %vm274 = vcmask 31744
        %v276 = vsel %vm274, %v239, 0
        %v279 = vsel %vm274, %v240, 0
        %v282 = vsel %vm274, %v241, 0
        %v285 = vsel %vm274, %v242, 0
        %v288 = vsel %vm274, %v243, 0
        %v291 = vsel %vm274, %v244, 0
        %v294 = vsel %vm274, %v245, 0
        %v297 = vsel %vm274, %v246, 0
        %v300 = vsel %vm274, %v247, 0
        %v303 = vsel %vm274, %v248, 0
        %v306 = vsel %vm274, %v249, 0
        %v309 = vsel %vm274, %v250, 0
        %v312 = vsel %vm274, %v251, 0
        %v315 = vsel %vm274, %v252, 0
        %v318 = vsel %vm274, %v253, 0
        %v321 = vsel %vm274, %v254, 0
        %vm323 = vcmask 1043456
        %v324 = vsel %vm323, %v238, 0
        %v326 = vsel %vm323, %v273, 0
        %328 = vmatprep.subr.mxu0 %v326
        %329 = vmatpush1.msra.mxu0 %v324
        %330 = vmatprep.subr.mxu0 0.0
        %331 = vmatpush1.msra.mxu0 0.0
        %332 = vmatprep.subr.mxu0 0.0
        %333 = vmatpush1.msra.mxu0 0.0
        %334 = vmatprep.subr.mxu0 0.0
        %335 = vmatpush1.msra.mxu0 0.0
        %336 = vmatprep.subr.mxu0 0.0
        %337 = vmatpush1.msra.mxu0 0.0
        %338 = vmatprep.subr.mxu0 0.0
        %339 = vmatpush1.msra.mxu0 0.0
        %340 = vmatprep.subr.mxu0 0.0
        %341 = vmatpush1.msra.mxu0 0.0
        %342 = vmatprep.subr.mxu0 0.0
        %343 = vmatpush1.msra.mxu0 0.0
        %344 = vmatprep.subr.mxu0 0.0
        %345 = vmatpush1.msra.mxu0 0.0
        %346 = vmatprep.subr.mxu0 0.0
        %347 = vmatpush1.msra.mxu0 0.0
        %348 = vmatprep.subr.mxu0 0.0
        %349 = vmatpush1.msra.mxu0 0.0
        %350 = vmatprep.subr.mxu0 0.0
        %351 = vmatpush1.msra.mxu0 0.0
        %352 = vmatprep.subr.mxu0 0.0
        %353 = vmatpush1.msra.mxu0 0.0
        %354 = vmatprep.subr.mxu0 0.0
        %355 = vmatpush1.msra.mxu0 0.0
        %356 = vmatprep.subr.mxu0 0.0
        %357 = vmatpush1.msra.mxu0 0.0
        %358 = vmatprep.subr.mxu0 0.0
        %359 = vmatpush1.msra.mxu0 0.0
        %360 = vmatprep.subr.mxu0 0.0
        %361 = vmatpush1.msra.mxu0 0.0
        %362 = vmatprep.subr.mxu0 0.0
        %363 = vmatpush1.msra.mxu0 0.0
        %364 = vmatprep.subr.mxu0 0.0
        %365 = vmatpush1.msra.mxu0 0.0
        %366 = vmatprep.subr.mxu0 0.0
        %367 = vmatpush1.msra.mxu0 0.0
        %368 = vmatprep.subr.mxu0 0.0
        %369 = vmatpush1.msra.mxu0 0.0
        %370 = vmatprep.subr.mxu0 0.0
        %371 = vmatpush1.msra.mxu0 0.0
        %372 = vmatprep.subr.mxu0 0.0
        %373 = vmatpush1.msra.mxu0 0.0
        %374 = vmatprep.subr.mxu0 0.0
        %375 = vmatpush1.msra.mxu0 0.0
        %376 = vmatprep.subr.mxu0 0.0
        %377 = vmatpush1.msra.mxu0 0.0
        %378 = vmatprep.subr.mxu0 0.0
        %379 = vmatpush1.msra.mxu0 0.0
        %380 = vmatprep.subr.mxu0 0.0
        %381 = vmatpush1.msra.mxu0 0.0
        %382 = vmatprep.subr.mxu0 0.0
        %383 = vmatpush1.msra.mxu0 0.0
        %384 = vmatprep.subr.mxu0 0.0
        %385 = vmatpush1.msra.mxu0 0.0
        %386 = vmatprep.subr.mxu0 0.0
        %387 = vmatpush1.msra.mxu0 0.0
        %388 = vmatprep.subr.mxu0 0.0
        %389 = vmatpush1.msra.mxu0 0.0
        %390 = vmatprep.subr.mxu0 0.0
        %391 = vmatpush1.msra.mxu0 0.0
        %392 = vmatprep.mubr.f32.mxu0 0.0
        %393 = vmatmul.mubr.f32.gmra.mrb[0].mxu0 %v276
        %v394 = vpop.f32.mrb[0].mxu0
        %v395 = vadd.f32 0.0, %v394
        %v396 = vpop.f32.mrb[0].mxu0
        %v397 = vadd.f32 0.0, %v396
        %398 = vmatprep.mubr.f32.mxu0 0.0
        %399 = vmatmul.mubr.f32.gmra.mrb[0].mxu0 %v279
        %v400 = vpop.f32.mrb[0].mxu0
        %v401 = vadd.f32 0.0, %v400
        %v402 = vpop.f32.mrb[0].mxu0
        %v403 = vadd.f32 0.0, %v402
        %404 = vmatprep.mubr.f32.mxu0 0.0
        %405 = vmatmul.mubr.f32.gmra.mrb[0].mxu0 %v282
        %v406 = vpop.f32.mrb[0].mxu0
        %v407 = vadd.f32 0.0, %v406
        %v408 = vpop.f32.mrb[0].mxu0
        %v409 = vadd.f32 0.0, %v408
        %410 = vmatprep.mubr.f32.mxu0 0.0
        %411 = vmatmul.mubr.f32.gmra.mrb[0].mxu0 %v285
        %v412 = vpop.f32.mrb[0].mxu0
        %v413 = vadd.f32 0.0, %v412
        %v414 = vpop.f32.mrb[0].mxu0
        %v415 = vadd.f32 0.0, %v414
        %416 = vmatprep.mubr.f32.mxu0 0.0
        %417 = vmatmul.mubr.f32.gmra.mrb[0].mxu0 %v288
        %v418 = vpop.f32.mrb[0].mxu0
        %v419 = vadd.f32 0.0, %v418
        %v420 = vpop.f32.mrb[0].mxu0
        %v421 = vadd.f32 0.0, %v420
        %422 = vmatprep.mubr.f32.mxu0 0.0
        %423 = vmatmul.mubr.f32.gmra.mrb[0].mxu0 %v291
        %v424 = vpop.f32.mrb[0].mxu0
        %v425 = vadd.f32 0.0, %v424
        %v426 = vpop.f32.mrb[0].mxu0
        %v427 = vadd.f32 0.0, %v426
        %428 = vmatprep.mubr.f32.mxu0 0.0
        %429 = vmatmul.mubr.f32.gmra.mrb[0].mxu0 %v294
        %v430 = vpop.f32.mrb[0].mxu0
        %v431 = vadd.f32 0.0, %v430
        %v432 = vpop.f32.mrb[0].mxu0
        %v433 = vadd.f32 0.0, %v432
        %434 = vmatprep.mubr.f32.mxu0 0.0
        %435 = vmatmul.mubr.f32.gmra.mrb[0].mxu0 %v297
        %v436 = vpop.f32.mrb[0].mxu0
        %v437 = vadd.f32 0.0, %v436
        %v438 = vpop.f32.mrb[0].mxu0
        %v439 = vadd.f32 0.0, %v438
        %440 = vmatprep.mubr.f32.mxu0 0.0
        %441 = vmatmul.mubr.f32.gmra.mrb[0].mxu0 %v300
        %v442 = vpop.f32.mrb[0].mxu0
        %v443 = vadd.f32 0.0, %v442
        %v444 = vpop.f32.mrb[0].mxu0
        %v445 = vadd.f32 0.0, %v444
        %446 = vmatprep.mubr.f32.mxu0 0.0
        %447 = vmatmul.mubr.f32.gmra.mrb[0].mxu0 %v303
        %v448 = vpop.f32.mrb[0].mxu0
        %v449 = vadd.f32 0.0, %v448
        %v450 = vpop.f32.mrb[0].mxu0
        %v451 = vadd.f32 0.0, %v450
        %452 = vmatprep.mubr.f32.mxu0 0.0
        %453 = vmatmul.mubr.f32.gmra.mrb[0].mxu0 %v306
        %v454 = vpop.f32.mrb[0].mxu0
        %v455 = vadd.f32 0.0, %v454
        %v456 = vpop.f32.mrb[0].mxu0
        %v457 = vadd.f32 0.0, %v456
        %458 = vmatprep.mubr.f32.mxu0 0.0
        %459 = vmatmul.mubr.f32.gmra.mrb[0].mxu0 %v309
        %v460 = vpop.f32.mrb[0].mxu0
        %v461 = vadd.f32 0.0, %v460
        %v462 = vpop.f32.mrb[0].mxu0
        %v463 = vadd.f32 0.0, %v462
        %464 = vmatprep.mubr.f32.mxu0 0.0
        %465 = vmatmul.mubr.f32.gmra.mrb[0].mxu0 %v312
        %v466 = vpop.f32.mrb[0].mxu0
        %v467 = vadd.f32 0.0, %v466
        %v468 = vpop.f32.mrb[0].mxu0
        %v469 = vadd.f32 0.0, %v468
        %470 = vmatprep.mubr.f32.mxu0 0.0
        %471 = vmatmul.mubr.f32.gmra.mrb[0].mxu0 %v315
        %v472 = vpop.f32.mrb[0].mxu0
        %v473 = vadd.f32 0.0, %v472
        %v474 = vpop.f32.mrb[0].mxu0
        %v475 = vadd.f32 0.0, %v474
        %476 = vmatprep.mubr.f32.mxu0 0.0
        %477 = vmatmul.mubr.f32.gmra.mrb[0].mxu0 %v318
        %v478 = vpop.f32.mrb[0].mxu0
        %v479 = vadd.f32 0.0, %v478
        %v480 = vpop.f32.mrb[0].mxu0
        %v481 = vadd.f32 0.0, %v480
        %482 = vmatprep.mubr.f32.mxu0 0.0
        %483 = vmatmul.mubr.f32.gmra.mrb[0].mxu0 %v321
        %v484 = vpop.f32.mrb[0].mxu0
        %v485 = vadd.f32 0.0, %v484
        %v486 = vpop.f32.mrb[0].mxu0
        %v487 = vadd.f32 0.0, %v486
        %488 = vdwg.mxu0
        %v489 = vmul.f32 %v395, 2.0
        %v490 = vmul.f32 %v397, 2.0
        %v491 = vmul.f32 %v401, 2.0
        %v492 = vmul.f32 %v403, 2.0
        %v493 = vmul.f32 %v407, 2.0
        %v494 = vmul.f32 %v409, 2.0
        %v495 = vmul.f32 %v413, 2.0
        %v496 = vmul.f32 %v415, 2.0
        %v497 = vmul.f32 %v419, 2.0
        %v498 = vmul.f32 %v421, 2.0
        %v499 = vmul.f32 %v425, 2.0
        %v500 = vmul.f32 %v427, 2.0
        %v501 = vmul.f32 %v431, 2.0
        %v502 = vmul.f32 %v433, 2.0
        %v503 = vmul.f32 %v437, 2.0
        %v504 = vmul.f32 %v439, 2.0
        %v505 = vmul.f32 %v443, 2.0
        %v506 = vmul.f32 %v445, 2.0
        %v507 = vmul.f32 %v449, 2.0
        %v508 = vmul.f32 %v451, 2.0
        %v509 = vmul.f32 %v455, 2.0
        %v510 = vmul.f32 %v457, 2.0
        %v511 = vmul.f32 %v461, 2.0
        %v512 = vmul.f32 %v463, 2.0
        %v513 = vmul.f32 %v467, 2.0
        %v514 = vmul.f32 %v469, 2.0
        %v515 = vmul.f32 %v473, 2.0
        %v516 = vmul.f32 %v475, 2.0
        %v517 = vmul.f32 %v479, 2.0
        %v518 = vmul.f32 %v481, 2.0
        %v519 = vmul.f32 %v485, 2.0
        %v520 = vmul.f32 %v487, 2.0
        %522 = vset.pattern.permute.xlu0 0
        %523 = vperm.xlu0 %522, %v256
        %v524 = vpop.permute.xlu0 %523
        %527 = vset.pattern.permute.xlu0 0
        %528 = vperm.xlu0 %527, %v257
        %v529 = vpop.permute.xlu0 %528
        %532 = vset.pattern.permute.xlu0 0
        %533 = vperm.xlu0 %532, %v258
        %v534 = vpop.permute.xlu0 %533
        %537 = vset.pattern.permute.xlu0 0
        %538 = vperm.xlu0 %537, %v259
        %v539 = vpop.permute.xlu0 %538
        %542 = vset.pattern.permute.xlu0 0
        %543 = vperm.xlu0 %542, %v260
        %v544 = vpop.permute.xlu0 %543
        %547 = vset.pattern.permute.xlu0 0
        %548 = vperm.xlu0 %547, %v261
        %v549 = vpop.permute.xlu0 %548
        %552 = vset.pattern.permute.xlu0 0
        %553 = vperm.xlu0 %552, %v262
        %v554 = vpop.permute.xlu0 %553
        %557 = vset.pattern.permute.xlu0 0
        %558 = vperm.xlu0 %557, %v263
        %v559 = vpop.permute.xlu0 %558
        %562 = vset.pattern.permute.xlu0 0
        %563 = vperm.xlu0 %562, %v264
        %v564 = vpop.permute.xlu0 %563
        %567 = vset.pattern.permute.xlu0 0
        %568 = vperm.xlu0 %567, %v265
        %v569 = vpop.permute.xlu0 %568
        %572 = vset.pattern.permute.xlu0 0
        %573 = vperm.xlu0 %572, %v266
        %v574 = vpop.permute.xlu0 %573
        %577 = vset.pattern.permute.xlu0 0
        %578 = vperm.xlu0 %577, %v267
        %v579 = vpop.permute.xlu0 %578
        %582 = vset.pattern.permute.xlu0 0
        %583 = vperm.xlu0 %582, %v268
        %v584 = vpop.permute.xlu0 %583
        %587 = vset.pattern.permute.xlu0 0
        %588 = vperm.xlu0 %587, %v269
        %v589 = vpop.permute.xlu0 %588
        %592 = vset.pattern.permute.xlu0 0
        %593 = vperm.xlu0 %592, %v270
        %v594 = vpop.permute.xlu0 %593
        %597 = vset.pattern.permute.xlu0 0
        %598 = vperm.xlu0 %597, %v271
        %v599 = vpop.permute.xlu0 %598
        %v601 = vsub.f32 %v524, %v489
        %v602 = vsub.f32 %v524, %v490
        %v603 = vsub.f32 %v529, %v491
        %v604 = vsub.f32 %v529, %v492
        %v605 = vsub.f32 %v534, %v493
        %v606 = vsub.f32 %v534, %v494
        %v607 = vsub.f32 %v539, %v495
        %v608 = vsub.f32 %v539, %v496
        %v609 = vsub.f32 %v544, %v497
        %v610 = vsub.f32 %v544, %v498
        %v611 = vsub.f32 %v549, %v499
        %v612 = vsub.f32 %v549, %v500
        %v613 = vsub.f32 %v554, %v501
        %v614 = vsub.f32 %v554, %v502
        %v615 = vsub.f32 %v559, %v503
        %v616 = vsub.f32 %v559, %v504
        %v617 = vsub.f32 %v564, %v505
        %v618 = vsub.f32 %v564, %v506
        %v619 = vsub.f32 %v569, %v507
        %v620 = vsub.f32 %v569, %v508
        %v621 = vsub.f32 %v574, %v509
        %v622 = vsub.f32 %v574, %v510
        %v623 = vsub.f32 %v579, %v511
        %v624 = vsub.f32 %v579, %v512
        %v625 = vsub.f32 %v584, %v513
        %v626 = vsub.f32 %v584, %v514
        %v627 = vsub.f32 %v589, %v515
        %v628 = vsub.f32 %v589, %v516
        %v629 = vsub.f32 %v594, %v517
        %v630 = vsub.f32 %v594, %v518
        %v631 = vsub.f32 %v599, %v519
        %v632 = vsub.f32 %v599, %v520
        %v633 = vmin.f32 %v601, %v605
        %v634 = vmin.f32 %v603, %v607
        %v635 = vmin.f32 %v633, %v609
        %v636 = vmin.f32 %v634, %v611
        %v637 = vmin.f32 %v635, %v613
        %v638 = vmin.f32 %v636, %v615
        %v639 = vmin.f32 %v637, %v617
        %v640 = vmin.f32 %v638, %v619
        %v641 = vmin.f32 %v639, %v621
        %v642 = vmin.f32 %v640, %v623
        %v643 = vmin.f32 %v641, %v625
        %v644 = vmin.f32 %v642, %v627
        %v645 = vmin.f32 %v643, %v629
        %v646 = vmin.f32 %v644, %v631
        %v647 = vmin.f32 %v645, %v646
        %v648 = vrot.slane %v647, 4
        %v649 = vmin.f32 %v647, %v648
        %v650 = vrot.slane %v649, 2
        %v651 = vmin.f32 %v649, %v650
        %v652 = vrot.slane %v651, 1
        %v653 = vmin.f32 %v651, %v652
        %v654 = vmin.f32 %v602, %v606
        %v655 = vmin.f32 %v604, %v608
        %v656 = vmin.f32 %v654, %v610
        %v657 = vmin.f32 %v655, %v612
        %v658 = vmin.f32 %v656, %v614
        %v659 = vmin.f32 %v657, %v616
        %v660 = vmin.f32 %v658, %v618
        %v661 = vmin.f32 %v659, %v620
        %v662 = vmin.f32 %v660, %v622
        %v663 = vmin.f32 %v661, %v624
        %v664 = vmin.f32 %v662, %v626
        %v665 = vmin.f32 %v663, %v628
        %v666 = vmin.f32 %v664, %v630
        %v667 = vmin.f32 %v665, %v632
        %v668 = vmin.f32 %v666, %v667
        %v669 = vrot.slane %v668, 4
        %v670 = vmin.f32 %v668, %v669
        %v671 = vrot.slane %v670, 2
        %v672 = vmin.f32 %v670, %v671
        %v673 = vrot.slane %v672, 1
        %v674 = vmin.f32 %v672, %v673
        %v675 = vlaneseq
        %v676 = vshrl.u32 %v675, 7
        %v677 = vadd.s32 %v676, 8
        %v678 = vadd.s32 %v676, 16
        %v679 = vadd.s32 %v676, 24
        %v680 = vadd.s32 %v676, 32
        %v681 = vadd.s32 %v676, 40
        %v682 = vadd.s32 %v676, 48
        %v683 = vadd.s32 %v676, 56
        %v684 = vadd.s32 %v676, 64
        %v685 = vadd.s32 %v676, 72
        %v686 = vadd.s32 %v676, 80
        %v687 = vadd.s32 %v676, 88
        %v688 = vadd.s32 %v676, 96
        %v689 = vadd.s32 %v676, 104
        %v690 = vadd.s32 %v676, 112
        %v691 = vadd.s32 %v676, 120
        %v692 = vcvt.s32.f32 %v676
        %v693 = vcvt.s32.f32 %v677
        %v694 = vcvt.s32.f32 %v678
        %v695 = vcvt.s32.f32 %v679
        %v696 = vcvt.s32.f32 %v680
        %v697 = vcvt.s32.f32 %v681
        %v698 = vcvt.s32.f32 %v682
        %v699 = vcvt.s32.f32 %v683
        %v700 = vcvt.s32.f32 %v684
        %v701 = vcvt.s32.f32 %v685
        %v702 = vcvt.s32.f32 %v686
        %v703 = vcvt.s32.f32 %v687
        %v704 = vcvt.s32.f32 %v688
        %v705 = vcvt.s32.f32 %v689
        %v706 = vcvt.s32.f32 %v690
        %v707 = vcvt.s32.f32 %v691
        %vm708 = vcmp.le.f32.partialorder %v601, %v653
        %vm709 = vcmp.le.f32.partialorder %v602, %v674
        %vm710 = vcmp.le.f32.partialorder %v603, %v653
        %vm711 = vcmp.le.f32.partialorder %v604, %v674
        %vm712 = vcmp.le.f32.partialorder %v605, %v653
        %vm713 = vcmp.le.f32.partialorder %v606, %v674
        %vm714 = vcmp.le.f32.partialorder %v607, %v653
        %vm715 = vcmp.le.f32.partialorder %v608, %v674
        %vm716 = vcmp.le.f32.partialorder %v609, %v653
        %vm717 = vcmp.le.f32.partialorder %v610, %v674
        %vm718 = vcmp.le.f32.partialorder %v611, %v653
        %vm719 = vcmp.le.f32.partialorder %v612, %v674
        %vm720 = vcmp.le.f32.partialorder %v613, %v653
        %vm721 = vcmp.le.f32.partialorder %v614, %v674
        %vm722 = vcmp.le.f32.partialorder %v615, %v653
        %vm723 = vcmp.le.f32.partialorder %v616, %v674
        %vm724 = vcmp.le.f32.partialorder %v617, %v653
        %vm725 = vcmp.le.f32.partialorder %v618, %v674
        %vm726 = vcmp.le.f32.partialorder %v619, %v653
        %vm727 = vcmp.le.f32.partialorder %v620, %v674
        %vm728 = vcmp.le.f32.partialorder %v621, %v653
        %vm729 = vcmp.le.f32.partialorder %v622, %v674
        %vm730 = vcmp.le.f32.partialorder %v623, %v653
        %vm731 = vcmp.le.f32.partialorder %v624, %v674
        %vm732 = vcmp.le.f32.partialorder %v625, %v653
        %vm733 = vcmp.le.f32.partialorder %v626, %v674
        %vm734 = vcmp.le.f32.partialorder %v627, %v653
        %vm735 = vcmp.le.f32.partialorder %v628, %v674
        %vm736 = vcmp.le.f32.partialorder %v629, %v653
        %vm737 = vcmp.le.f32.partialorder %v630, %v674
        %vm738 = vcmp.le.f32.partialorder %v631, %v653
        %vm739 = vcmp.le.f32.partialorder %v632, %v674
        %v740 = vsel %vm708, %v692, 128.0
        %v741 = vsel %vm709, %v692, 128.0
        %v742 = vsel %vm710, %v693, 128.0
        %v743 = vsel %vm711, %v693, 128.0
        %v744 = vsel %vm712, %v694, 128.0
        %v745 = vsel %vm713, %v694, 128.0
        %v746 = vsel %vm714, %v695, 128.0
        %v747 = vsel %vm715, %v695, 128.0
        %v748 = vsel %vm716, %v696, 128.0
        %v749 = vsel %vm717, %v696, 128.0
        %v750 = vsel %vm718, %v697, 128.0
        %v751 = vsel %vm719, %v697, 128.0
        %v752 = vsel %vm720, %v698, 128.0
        %v753 = vsel %vm721, %v698, 128.0
        %v754 = vsel %vm722, %v699, 128.0
        %v755 = vsel %vm723, %v699, 128.0
        %v756 = vsel %vm724, %v700, 128.0
        %v757 = vsel %vm725, %v700, 128.0
        %v758 = vsel %vm726, %v701, 128.0
        %v759 = vsel %vm727, %v701, 128.0
        %v760 = vsel %vm728, %v702, 128.0
        %v761 = vsel %vm729, %v702, 128.0
        %v762 = vsel %vm730, %v703, 128.0
        %v763 = vsel %vm731, %v703, 128.0
        %v764 = vsel %vm732, %v704, 128.0
        %v765 = vsel %vm733, %v704, 128.0
        %v766 = vsel %vm734, %v705, 128.0
        %v767 = vsel %vm735, %v705, 128.0
        %v768 = vsel %vm736, %v706, 128.0
        %v769 = vsel %vm737, %v706, 128.0
        %v770 = vsel %vm738, %v707, 128.0
        %v771 = vsel %vm739, %v707, 128.0
        %v772 = vmin.f32 %v740, %v744
        %v773 = vmin.f32 %v742, %v746
        %v774 = vmin.f32 %v772, %v748
        %v775 = vmin.f32 %v773, %v750
        %v776 = vmin.f32 %v774, %v752
        %v777 = vmin.f32 %v775, %v754
        %v778 = vmin.f32 %v776, %v756
        %v779 = vmin.f32 %v777, %v758
        %v780 = vmin.f32 %v778, %v760
        %v781 = vmin.f32 %v779, %v762
        %v782 = vmin.f32 %v780, %v764
        %v783 = vmin.f32 %v781, %v766
        %v784 = vmin.f32 %v782, %v768
        %v785 = vmin.f32 %v783, %v770
        %v786 = vmin.f32 %v784, %v785
        %v787 = vrot.slane %v786, 4
        %v788 = vmin.f32 %v786, %v787
        %v789 = vrot.slane %v788, 2
        %v790 = vmin.f32 %v788, %v789
        %v791 = vrot.slane %v790, 1
        %v792 = vmin.f32 %v790, %v791
        %v793 = vmin.f32 %v741, %v745
        %v794 = vmin.f32 %v743, %v747
        %v795 = vmin.f32 %v793, %v749
        %v796 = vmin.f32 %v794, %v751
        %v797 = vmin.f32 %v795, %v753
        %v798 = vmin.f32 %v796, %v755
        %v799 = vmin.f32 %v797, %v757
        %v800 = vmin.f32 %v798, %v759
        %v801 = vmin.f32 %v799, %v761
        %v802 = vmin.f32 %v800, %v763
        %v803 = vmin.f32 %v801, %v765
        %v804 = vmin.f32 %v802, %v767
        %v805 = vmin.f32 %v803, %v769
        %v806 = vmin.f32 %v804, %v771
        %v807 = vmin.f32 %v805, %v806
        %v808 = vrot.slane %v807, 4
        %v809 = vmin.f32 %v807, %v808
        %v810 = vrot.slane %v809, 2
        %v811 = vmin.f32 %v809, %v810
        %v812 = vrot.slane %v811, 1
        %v813 = vmin.f32 %v811, %v812
        %vm814 = vcmp.eq.f32.partialorder %v692, %v792
        %vm815 = vcmp.eq.f32.partialorder %v692, %v813
        %vm816 = vcmp.eq.f32.partialorder %v693, %v792
        %vm817 = vcmp.eq.f32.partialorder %v693, %v813
        %vm818 = vcmp.eq.f32.partialorder %v694, %v792
        %vm819 = vcmp.eq.f32.partialorder %v694, %v813
        %vm820 = vcmp.eq.f32.partialorder %v695, %v792
        %vm821 = vcmp.eq.f32.partialorder %v695, %v813
        %vm822 = vcmp.eq.f32.partialorder %v696, %v792
        %vm823 = vcmp.eq.f32.partialorder %v696, %v813
        %vm824 = vcmp.eq.f32.partialorder %v697, %v792
        %vm825 = vcmp.eq.f32.partialorder %v697, %v813
        %vm826 = vcmp.eq.f32.partialorder %v698, %v792
        %vm827 = vcmp.eq.f32.partialorder %v698, %v813
        %vm828 = vcmp.eq.f32.partialorder %v699, %v792
        %vm829 = vcmp.eq.f32.partialorder %v699, %v813
        %vm830 = vcmp.eq.f32.partialorder %v700, %v792
        %vm831 = vcmp.eq.f32.partialorder %v700, %v813
        %vm832 = vcmp.eq.f32.partialorder %v701, %v792
        %vm833 = vcmp.eq.f32.partialorder %v701, %v813
        %vm834 = vcmp.eq.f32.partialorder %v702, %v792
        %vm835 = vcmp.eq.f32.partialorder %v702, %v813
        %vm836 = vcmp.eq.f32.partialorder %v703, %v792
        %vm837 = vcmp.eq.f32.partialorder %v703, %v813
        %vm838 = vcmp.eq.f32.partialorder %v704, %v792
        %vm839 = vcmp.eq.f32.partialorder %v704, %v813
        %vm840 = vcmp.eq.f32.partialorder %v705, %v792
        %vm841 = vcmp.eq.f32.partialorder %v705, %v813
        %vm842 = vcmp.eq.f32.partialorder %v706, %v792
        %vm843 = vcmp.eq.f32.partialorder %v706, %v813
        %vm844 = vcmp.eq.f32.partialorder %v707, %v792
        %vm845 = vcmp.eq.f32.partialorder %v707, %v813
        %v846 = vsel %vm814, 1, 0
        %v847 = vsel %vm815, 1, 0
        %v848 = vsel %vm816, 1, 0
        %v849 = vsel %vm817, 1, 0
        %v850 = vsel %vm818, 1, 0
        %v851 = vsel %vm819, 1, 0
        %v852 = vsel %vm820, 1, 0
        %v853 = vsel %vm821, 1, 0
        %v854 = vsel %vm822, 1, 0
        %v855 = vsel %vm823, 1, 0
        %v856 = vsel %vm824, 1, 0
        %v857 = vsel %vm825, 1, 0
        %v858 = vsel %vm826, 1, 0
        %v859 = vsel %vm827, 1, 0
        %v860 = vsel %vm828, 1, 0
        %v861 = vsel %vm829, 1, 0
        %v862 = vsel %vm830, 1, 0
        %v863 = vsel %vm831, 1, 0
        %v864 = vsel %vm832, 1, 0
        %v865 = vsel %vm833, 1, 0
        %v866 = vsel %vm834, 1, 0
        %v867 = vsel %vm835, 1, 0
        %v868 = vsel %vm836, 1, 0
        %v869 = vsel %vm837, 1, 0
        %v870 = vsel %vm838, 1, 0
        %v871 = vsel %vm839, 1, 0
        %v872 = vsel %vm840, 1, 0
        %v873 = vsel %vm841, 1, 0
        %v874 = vsel %vm842, 1, 0
        %v875 = vsel %vm843, 1, 0
        %v876 = vsel %vm844, 1, 0
        %v877 = vsel %vm845, 1, 0
        %v878 = vcvt.s32.f32 %v846
        %v879 = vcvt.s32.f32 %v847
        %v880 = vcvt.s32.f32 %v848
        %v881 = vcvt.s32.f32 %v849
        %v882 = vcvt.s32.f32 %v850
        %v883 = vcvt.s32.f32 %v851
        %v884 = vcvt.s32.f32 %v852
        %v885 = vcvt.s32.f32 %v853
        %v886 = vcvt.s32.f32 %v854
        %v887 = vcvt.s32.f32 %v855
        %v888 = vcvt.s32.f32 %v856
        %v889 = vcvt.s32.f32 %v857
        %v890 = vcvt.s32.f32 %v858
        %v891 = vcvt.s32.f32 %v859
        %v892 = vcvt.s32.f32 %v860
        %v893 = vcvt.s32.f32 %v861
        %v894 = vcvt.s32.f32 %v862
        %v895 = vcvt.s32.f32 %v863
        %v896 = vcvt.s32.f32 %v864
        %v897 = vcvt.s32.f32 %v865
        %v898 = vcvt.s32.f32 %v866
        %v899 = vcvt.s32.f32 %v867
        %v900 = vcvt.s32.f32 %v868
        %v901 = vcvt.s32.f32 %v869
        %v902 = vcvt.s32.f32 %v870
        %v903 = vcvt.s32.f32 %v871
        %v904 = vcvt.s32.f32 %v872
        %v905 = vcvt.s32.f32 %v873
        %v906 = vcvt.s32.f32 %v874
        %v907 = vcvt.s32.f32 %v875
        %v908 = vcvt.s32.f32 %v876
        %v909 = vcvt.s32.f32 %v877
        %910 = vmatprep.subr.mxu0 %v879
        %911 = vmatpush1.msra.mxu0 %v878
        %912 = vmatprep.subr.mxu0 %v881
        %913 = vmatpush1.msra.mxu0 %v880
        %914 = vmatprep.subr.mxu0 %v883
        %915 = vmatpush1.msra.mxu0 %v882
        %916 = vmatprep.subr.mxu0 %v885
        %917 = vmatpush1.msra.mxu0 %v884
        %918 = vmatprep.subr.mxu0 %v887
        %919 = vmatpush1.msra.mxu0 %v886
        %920 = vmatprep.subr.mxu0 %v889
        %921 = vmatpush1.msra.mxu0 %v888
        %922 = vmatprep.subr.mxu0 %v891
        %923 = vmatpush1.msra.mxu0 %v890
        %924 = vmatprep.subr.mxu0 %v893
        %925 = vmatpush1.msra.mxu0 %v892
        %926 = vmatprep.subr.mxu0 %v895
        %927 = vmatpush1.msra.mxu0 %v894
        %928 = vmatprep.subr.mxu0 %v897
        %929 = vmatpush1.msra.mxu0 %v896
        %930 = vmatprep.subr.mxu0 %v899
        %931 = vmatpush1.msra.mxu0 %v898
        %932 = vmatprep.subr.mxu0 %v901
        %933 = vmatpush1.msra.mxu0 %v900
        %934 = vmatprep.subr.mxu0 %v903
        %935 = vmatpush1.msra.mxu0 %v902
        %936 = vmatprep.subr.mxu0 %v905
        %937 = vmatpush1.msra.mxu0 %v904
        %938 = vmatprep.subr.mxu0 %v907
        %939 = vmatpush1.msra.mxu0 %v906
        %940 = vmatprep.subr.mxu0 %v909
        %941 = vmatpush1.msra.mxu0 %v908
        %942 = vmatprep.subr.mxu0 0.0
        %943 = vmatpush1.msra.mxu0 0.0
        %944 = vmatprep.subr.mxu0 0.0
        %945 = vmatpush1.msra.mxu0 0.0
        %946 = vmatprep.subr.mxu0 0.0
        %947 = vmatpush1.msra.mxu0 0.0
        %948 = vmatprep.subr.mxu0 0.0
        %949 = vmatpush1.msra.mxu0 0.0
        %950 = vmatprep.subr.mxu0 0.0
        %951 = vmatpush1.msra.mxu0 0.0
        %952 = vmatprep.subr.mxu0 0.0
        %953 = vmatpush1.msra.mxu0 0.0
        %954 = vmatprep.subr.mxu0 0.0
        %955 = vmatpush1.msra.mxu0 0.0
        %956 = vmatprep.subr.mxu0 0.0
        %957 = vmatpush1.msra.mxu0 0.0
        %958 = vmatprep.subr.mxu0 0.0
        %959 = vmatpush1.msra.mxu0 0.0
        %960 = vmatprep.subr.mxu0 0.0
        %961 = vmatpush1.msra.mxu0 0.0
        %962 = vmatprep.subr.mxu0 0.0
        %963 = vmatpush1.msra.mxu0 0.0
        %964 = vmatprep.subr.mxu0 0.0
        %965 = vmatpush1.msra.mxu0 0.0
        %966 = vmatprep.subr.mxu0 0.0
        %967 = vmatpush1.msra.mxu0 0.0
        %968 = vmatprep.subr.mxu0 0.0
        %969 = vmatpush1.msra.mxu0 0.0
        %970 = vmatprep.subr.mxu0 0.0
        %971 = vmatpush1.msra.mxu0 0.0
        %972 = vmatprep.subr.mxu0 0.0
        %973 = vmatpush1.msra.mxu0 0.0
        %974 = vmatprep.mubr.f32.mxu0 0.0
        %975 = vmatmul.mubr.f32.gmra.mrb[0].mxu0 %v255
        %v976 = vpop.f32.mrb[0].mxu0
        %v977 = vadd.f32 0.0, %v976
        %v978 = vpop.f32.mrb[0].mxu0
        %v979 = vadd.f32 0.0, %v978
        %980 = vdwg.mxu0
        %v983 = vcombine.low %v977, %v979
        %985 = vst [vmem:[%s222] sm:$0xff] %v983
        %v986 = vcvt.f32.s32.to.zero.pseudo %v792
        %v987 = vcvt.f32.s32.to.zero.pseudo %v813
        %v988 = vcombine.low %v986, %v987
        %v990 = vunpack.c.l.s4 1966171168
        %v991 = vunpack.c.0.s8 %v990
        %v992 = vlaneseq
        %v993 = vshrl.u32 %v992, 7
        %v994 = vsub.s32 %v991, %v993
        %v995 = vrot.slane %v988, %v994
        %v997 = vunpack.c.l.s4 1966171168
        %v998 = vunpack.c.0.s8 %v997
        %v999 = vlaneseq
        %v1000 = vshrl.u32 %v999, 7
        %v1001 = vsub.s32 %v998, %v1000
        %v1002 = vrot.slane %v995, %v1001
        %v1003 = vlaneseq
        %vm1004 = vcmp.ge.s32.totalorder %v1003, 0
        %vm1005 = vcmp.lt.s32.totalorder %v1003, 256
        %vm1006 = vmand %vm1004, %vm1005
        %1007 = vst.msk [vmem:[%s229] sm:$0x3] %vm1006, %v1002
        %s1008 = sand.u32 %s120, 1
        %s1009 = scalar_lea.sflag [#allocation3], %s1008
        %s1010 = sand.u32 %s120, 1
        %s1011 = smul.addr %s1010, 8
        %s1012 = scalar_lea.vmem [#allocation2], %s1011
        %s1013 = sand.u32 %s146, 1
        %s1014 = scalar_lea.sflag [#allocation5], %s1013
        %s1015 = sand.u32 %s146, 1
        %s1016 = smul.addr %s1015, 2
        %s1017 = scalar_lea.vmem [#allocation4], %s1016
        // Predicated region
        $region37: #{tpu_custom_call.1} parent=35 // pred_check
          %p1018 = pneg %p130
        $region38: #{tpu_custom_call.1} parent=35 // pred_check_branch
          %1020 = sbr.rel (%p1018) target = $region40
        $region39: #{tpu_custom_call.1} parent=35 // pred_region
          %s1021 = smul.u32 2, %s23
          %s1023 = ssub.s32 128, 128
          %1024 = vsyncadd %s1009, %s1023
          %s1025 = smul.addr %s1021, 64
          %s1026 = scalar_lea.hbm %s4, %s1025
          %s1028 = sshll.u32 %s1012, 4
          %s1029 = int_to_ptr.vmem [resolvable:$true] %s1028
          %1031 = dma.vmem_to_hbm [thread:$0]  %s1029, 128, %s1026, %s1009
        $region40: #{tpu_custom_call.1} parent=35 // pred_fallthru
          _
        // Predicated region
        $region41: #{tpu_custom_call.1} parent=35 // pred_check
          %p1032 = pneg %p156
        $region42: #{tpu_custom_call.1} parent=35 // pred_check_branch
          %1034 = sbr.rel (%p1032) target = $region44
        $region43: #{tpu_custom_call.1} parent=35 // pred_region
          %s1035 = smul.u32 2, %s23
          %s1037 = ssub.s32 32, 32
          %1038 = vsyncadd %s1014, %s1037
          %s1039 = smul.addr %s1035, 16
          %s1040 = scalar_lea.hbm %s5, %s1039
          %s1042 = sshll.u32 %s1017, 4
          %s1043 = int_to_ptr.vmem [resolvable:$true] %s1042
          %1045 = dma.vmem_to_hbm [thread:$0]  %s1043, 32, %s1040, %s1014
        $region44: #{tpu_custom_call.1} parent=35 // pred_fallthru
          _
      $region36: #{tpu_custom_call.1} parent=5 // pred_fallthru
        _
      %p1046 = scmp.le.s32.totalorder 2, %s18
      // Predicated region
      $region45: #{tpu_custom_call.1} parent=5 // pred_check
        %p1047 = pneg %p1046
      $region46: #{tpu_custom_call.1} parent=5 // pred_check_branch
        %1049 = sbr.rel (%p1047) target = $region48
      $region47: #{tpu_custom_call.1} parent=5 // pred_region
        %s1050 = ssub.s32 %s18, 2
        // Predicated region
        $region49: #{tpu_custom_call.1} parent=47 // pred_check
          %p1051 = pneg %p136
        $region50: #{tpu_custom_call.1} parent=47 // pred_check_branch
          %1053 = sbr.rel (%p1051) target = $region52
        $region51: #{tpu_custom_call.1} parent=47 // pred_region
          %s1054 = sand.u32 %s121, 1
          %s1055 = scalar_lea.sflag [#allocation3], %s1054
          %s1056 = sand.u32 %s121, 1
          %s1057 = smul.addr %s1056, 8
          %s1058 = scalar_lea.vmem [#allocation2], %s1057
          %1059 = dma.done %s1055, 128
        $region52: #{tpu_custom_call.1} parent=47 // pred_fallthru
          _
        // Predicated region
        $region53: #{tpu_custom_call.1} parent=47 // pred_check
          %p1060 = pneg %p162
        $region54: #{tpu_custom_call.1} parent=47 // pred_check_branch
          %1062 = sbr.rel (%p1060) target = $region56
        $region55: #{tpu_custom_call.1} parent=47 // pred_region
          %s1063 = sand.u32 %s147, 1
          %s1064 = scalar_lea.sflag [#allocation5], %s1063
          %s1065 = sand.u32 %s147, 1
          %s1066 = smul.addr %s1065, 2
          %s1067 = scalar_lea.vmem [#allocation4], %s1066
          %1068 = dma.done %s1064, 32
        $region56: #{tpu_custom_call.1} parent=47 // pred_fallthru
          _
      $region48: #{tpu_custom_call.1} parent=5 // pred_fallthru
        _
    $region6: #{tpu_custom_call.1} parent=1 // loop_footer
      %s22 = sadd.s32 1, %s18
    $region7: #{tpu_custom_call.1} parent=1 // loop_footer_branch
      %17 = sbr.rel target = $region3
    $region8: #{tpu_custom_call.1} parent=1 // loop_exit
      _
    %1069 = vsyncpa [#allocation3], 1
    %s1070 = scalar_lea.sflag [#allocation3], 1
    %1071 = vsyncpa %s1070, 1
    %1072 = vsyncpa [#allocation5], 1
    %s1073 = scalar_lea.sflag [#allocation5], 1
    %1074 = vsyncpa %s1073, 1

</llo_original>
